<compile_context>
chip_gen: v6e
topology: v6e:2x2x1
jax: 0.10.0
libtpu: 0.0.40
codegen_flags: <defaults>
</compile_context>

<pallas_src>
import math

import jax
import jax.numpy as jnp
from jax.experimental import pallas as pl
from jax.experimental.pallas import tpu as pltpu

ALPHA = 20.0                       # matches the default alpha=20 in the PyTorch module
NUM_OPS = 7
_E_ALPHA = math.exp(ALPHA)         # exp(20) ~ 4.85e8, compile-time scalar
_INV_E_ALPHA = math.exp(-ALPHA)


def _recip(d):
    """1/d: EUP approx reciprocal + one Newton-Raphson VPU step (~f32 precision)."""
    r = pl.reciprocal(d, approx=True)
    return r * (2.0 - d * r)


def logic_ops_kernel(x_ref, y_ref, out_ref):
    """Fused fuzzy-logic primitives on one (tb, C) tile; writes (tb, 7*C)."""
    x = x_ref[...]
    y = y_ref[...]
    if x.dtype != jnp.float32:
        x = x.astype(jnp.float32)
    if y.dtype != jnp.float32:
        y = y.astype(jnp.float32)

    C = x.shape[-1]
    dt = out_ref.dtype
    one = jnp.float32(1.0)
    e_a = jnp.float32(_E_ALPHA)
    inv_e_a = jnp.float32(_INV_E_ALPHA)

    # Ops that need only x/y: store first to release them from long live ranges.
    out_ref[:, pl.ds(1 * C, C)] = (one - jnp.abs(x - y)).astype(dt)   # equivalence
    out_ref[:, pl.ds(2 * C, C)] = (one - x).astype(dt)                # negation

    # Only two transcendentals per element; everything else derived on the VPU.
    ex = jnp.exp(ALPHA * x)                # EUP
    ey = jnp.exp(ALPHA * y)                # EUP
    exy = ex * ey                          # exp(alpha*(x+y))
    es = exy * inv_e_a                     # exp(alpha*(x+y-1))

    r_xy = _recip(ex + ey)                 # shared: implication / weak_conj / weak_disj
    r_sc = _recip(one + es)                # strong_conj
    r_sd = _recip(exy + e_a)               # strong_disj

    t = one - x + y
    s = x + y - one
    u = x + y

    out_ref[:, pl.ds(0 * C, C)] = ((ey + t * ex) * r_xy).astype(dt)        # softmin(1, 1-x+y)
    out_ref[:, pl.ds(3 * C, C)] = ((x * ey + y * ex) * r_xy).astype(dt)    # softmin(x, y)
    out_ref[:, pl.ds(4 * C, C)] = ((x * ex + y * ey) * r_xy).astype(dt)    # softmax(x, y)
    out_ref[:, pl.ds(5 * C, C)] = (s * es * r_sc).astype(dt)               # softmax(0, x+y-1)
    out_ref[:, pl.ds(6 * C, C)] = ((exy + u * e_a) * r_sd).astype(dt)      # softmin(1, x+y)


def _pick_row_block(B, bytes_per_row, budget_bytes, min_grid_steps=4):
    """Largest row tile (multiple of 8, or B when B<=8) whose double-buffered
    working set fits budget_bytes; kept small enough for >=min_grid_steps grid
    steps when B allows, so both v7x TensorCores get work."""
    if B <= 8:
        return B
    tb = max(8, budget_bytes // (2 * bytes_per_row))
    tb = min(tb, 1024, B)
    if B >= 8 * min_grid_steps:
        tb = min(tb, pl.cdiv(B, min_grid_steps))
    tb = max(8, (tb // 8) * 8)
    return tb
    # TODO(synk): if C is so large that even tb=8 exceeds the budget
    # (~72K f32 columns), a column-tiled fallback would be needed.


def logic_inference_ops(x, y, *, out_dtype=jnp.float32):
    """Apply all LogicInferenceBase logic ops elementwise.

    x, y: [B, C] arrays (f32 or bf16; bf16 inputs halve read traffic, math is
    always f32 in-kernel).  Returns [B, 7, C] `out_dtype` in the op order
    (implication, equivalence, negation, weak_conj, weak_disj,
     strong_conj, strong_disj).  Pass out_dtype=jnp.bfloat16 to cut the
    dominant HBM writeback traffic roughly in half (deliberate deviation from
    the torch float32 semantics).  Valid input domain: x + y < ~4.4.
    """
    assert x.shape == y.shape and x.ndim == 2, (x.shape, y.shape)
    B, C = x.shape
    out_dtype = jnp.dtype(out_dtype)

    in_bytes = jnp.dtype(x.dtype).itemsize + jnp.dtype(y.dtype).itemsize
    bytes_per_row = C * (in_bytes + NUM_OPS * out_dtype.itemsize)

    # Generation-aware VMEM budgeting: v5e/v6e have 128 MiB physical VMEM,
    # v7x only 64 MiB -> cap the scoped limit at 75% of physical (48 MiB on
    # v7x, 64 MiB elsewhere) and size tiles to ~85% of that.
    try:
        vmem_cap = int(pltpu.get_tpu_info().vmem_capacity_bytes)
    except Exception:
        vmem_cap = 128 << 20
    vmem_limit = min(64 << 20, (vmem_cap * 3) // 4)
    budget = int(vmem_limit * 0.85)

    tb = _pick_row_block(B, bytes_per_row, budget)
    grid = (pl.cdiv(B, tb),)

    out = pl.pallas_call(
        logic_ops_kernel,
        out_shape=jax.ShapeDtypeStruct((B, NUM_OPS * C), out_dtype),
        grid=grid,
        in_specs=[
            pl.BlockSpec((tb, C), lambda i: (i, 0)),
            pl.BlockSpec((tb, C), lambda i: (i, 0)),
        ],
        out_specs=pl.BlockSpec((tb, NUM_OPS * C), lambda i: (i, 0)),
        compiler_params=pltpu.CompilerParams(
            dimension_semantics=("parallel",),
            vmem_limit_bytes=vmem_limit),
        cost_estimate=pl.CostEstimate(
            flops=40 * B * C,
            transcendentals=2 * B * C,
            bytes_accessed=B * bytes_per_row),
    )(x, y)
    return out.reshape(B, NUM_OPS, C)


def _reference(x, y, alpha=ALPHA):
    """Pure-JAX reference mirroring the PyTorch staticmethods literally ([7,B,C])."""
    def softmax(a, b):
        ea = jnp.exp(alpha * a)
        eb = jnp.exp(alpha * b)
        return (a * ea + b * eb) / (ea + eb)

    def softmin(a, b):
        return -softmax(-a, -b)

    one = jnp.float32(1.0)
    ones = jnp.ones_like(x)
    zeros = jnp.zeros_like(x)
    return jnp.stack(
        [
            softmin(ones, one - x + y),        # implication
            one - jnp.abs(x - y),              # equivalence
            one - x,                           # negation
            softmin(x, y),                     # weak conjunction
            softmax(x, y),                     # weak disjunction
            softmax(zeros, x + y - one),       # strong conjunction
            softmin(ones, x + y),              # strong disjunction
        ],
        axis=0,
    )


if __name__ == "__main__":
    # LogicInferenceBase.test_forward feeds (2, in_channels); pick
    # in_channels=128 (lane-aligned) and fuzzy truth values in [0, 1].
    B, C = 2, 128
    key = jax.random.PRNGKey(0)
    kx, ky = jax.random.split(key)
    x = jax.random.uniform(kx, (B, C), dtype=jnp.float32)
    y = jax.random.uniform(ky, (B, C), dtype=jnp.float32)

    out = jax.block_until_ready(logic_inference_ops(x, y))
    ref = jnp.moveaxis(_reference(x, y), 0, 1)   # [7,B,C] -> [B,7,C]

    assert out.shape == (B, NUM_OPS, C), out.shape
    # Exp-sharing / shared-denominator rewrite and the NR-refined approx
    # reciprocal are algebraically exact but not bit-identical to the
    # negate-exp-negate reference; observed error ~1e-6, asserted at 1e-4.
    assert jnp.allclose(out, ref, atol=1e-4, rtol=1e-4), "mismatch vs reference"

    print("KERNEL_OK")
</pallas_src>

<mosaic_0001>
module attributes {stable_mosaic.version = 11 : i64} {
  func.func @logic_ops_kernel(%arg0: i32, %arg1: memref<2x128xf32, #tpu.memory_space<vmem>>, %arg2: memref<2x128xf32, #tpu.memory_space<vmem>>, %arg3: memref<2x896xf32, #tpu.memory_space<vmem>>) attributes {dimension_semantics = [#tpu.dimension_semantics<parallel>], iteration_bounds = array<i64: 1>, scalar_prefetch = 0 : i64, scratch_operands = 0 : i64, tpu.core_type = #tpu.core_type<tc>, window_params = [{transform_indices = @transform_0, window_bounds = array<i64: 2, 128>}, {transform_indices = @transform_1, window_bounds = array<i64: 2, 128>}, {transform_indices = @transform_2, window_bounds = array<i64: 2, 896>}]} {
    %c0 = arith.constant 0 : index
    %c0_0 = arith.constant 0 : index
    %0 = vector.load %arg1[%c0, %c0_0] : memref<2x128xf32, #tpu.memory_space<vmem>>, vector<2x128xf32>
    %c0_1 = arith.constant 0 : index
    %c0_2 = arith.constant 0 : index
    %1 = vector.load %arg2[%c0_1, %c0_2] : memref<2x128xf32, #tpu.memory_space<vmem>>, vector<2x128xf32>
    %2 = arith.subf %0, %1 : vector<2x128xf32>
    %3 = math.absf %2 : vector<2x128xf32>
    %cst = arith.constant 1.000000e+00 : f32
    %4 = vector.broadcast %cst : f32 to vector<2x128xf32>
    %5 = arith.subf %4, %3 : vector<2x128xf32>
    %c0_3 = arith.constant 0 : index
    %c128 = arith.constant 128 : index
    %6 = vector.load %arg3[%c0_3, %c128] : memref<2x896xf32, #tpu.memory_space<vmem>>, vector<2x128xf32>
    tpu.vector_store %arg3[%c0_3, %c128], %5 {strides = array<i32>} : memref<2x896xf32, #tpu.memory_space<vmem>>, vector<2x128xf32>,
    %cst_4 = arith.constant 1.000000e+00 : f32
    %7 = vector.broadcast %cst_4 : f32 to vector<2x128xf32>
    %8 = arith.subf %7, %0 : vector<2x128xf32>
    %c0_5 = arith.constant 0 : index
    %c256 = arith.constant 256 : index
    %9 = vector.load %arg3[%c0_5, %c256] : memref<2x896xf32, #tpu.memory_space<vmem>>, vector<2x128xf32>
    tpu.vector_store %arg3[%c0_5, %c256], %8 {strides = array<i32>} : memref<2x896xf32, #tpu.memory_space<vmem>>, vector<2x128xf32>,
    %cst_6 = arith.constant 2.000000e+01 : f32
    %10 = vector.broadcast %cst_6 : f32 to vector<2x128xf32>
    %11 = arith.mulf %10, %0 : vector<2x128xf32>
    %12 = math.exp %11 : vector<2x128xf32>
    %cst_7 = arith.constant 2.000000e+01 : f32
    %13 = vector.broadcast %cst_7 : f32 to vector<2x128xf32>
    %14 = arith.mulf %13, %1 : vector<2x128xf32>
    %15 = math.exp %14 : vector<2x128xf32>
    %16 = arith.mulf %12, %15 : vector<2x128xf32>
    %cst_8 = arith.constant 2.06115369E-9 : f32
    %17 = vector.broadcast %cst_8 : f32 to vector<2x128xf32>
    %18 = arith.mulf %16, %17 : vector<2x128xf32>
    %19 = arith.addf %12, %15 : vector<2x128xf32>
    %20 = tpu.reciprocal %19 {approx = true} : vector<2x128xf32> -> vector<2x128xf32>
    %21 = arith.mulf %19, %20 : vector<2x128xf32>
    %cst_9 = arith.constant 2.000000e+00 : f32
    %22 = vector.broadcast %cst_9 : f32 to vector<2x128xf32>
    %23 = arith.subf %22, %21 : vector<2x128xf32>
    %24 = arith.mulf %20, %23 : vector<2x128xf32>
    %cst_10 = arith.constant 1.000000e+00 : f32
    %25 = vector.broadcast %cst_10 : f32 to vector<2x128xf32>
    %26 = arith.addf %25, %18 : vector<2x128xf32>
    %27 = tpu.reciprocal %26 {approx = true} : vector<2x128xf32> -> vector<2x128xf32>
    %28 = arith.mulf %26, %27 : vector<2x128xf32>
    %cst_11 = arith.constant 2.000000e+00 : f32
    %29 = vector.broadcast %cst_11 : f32 to vector<2x128xf32>
    %30 = arith.subf %29, %28 : vector<2x128xf32>
    %31 = arith.mulf %27, %30 : vector<2x128xf32>
    %cst_12 = arith.constant 0x4DE75844 : f32
    %32 = vector.broadcast %cst_12 : f32 to vector<2x128xf32>
    %33 = arith.addf %16, %32 : vector<2x128xf32>
    %34 = tpu.reciprocal %33 {approx = true} : vector<2x128xf32> -> vector<2x128xf32>
    %35 = arith.mulf %33, %34 : vector<2x128xf32>
    %cst_13 = arith.constant 2.000000e+00 : f32
    %36 = vector.broadcast %cst_13 : f32 to vector<2x128xf32>
    %37 = arith.subf %36, %35 : vector<2x128xf32>
    %38 = arith.mulf %34, %37 : vector<2x128xf32>
    %cst_14 = arith.constant 1.000000e+00 : f32
    %39 = vector.broadcast %cst_14 : f32 to vector<2x128xf32>
    %40 = arith.subf %39, %0 : vector<2x128xf32>
    %41 = arith.addf %40, %1 : vector<2x128xf32>
    %42 = arith.addf %0, %1 : vector<2x128xf32>
    %cst_15 = arith.constant 1.000000e+00 : f32
    %43 = vector.broadcast %cst_15 : f32 to vector<2x128xf32>
    %44 = arith.subf %42, %43 : vector<2x128xf32>
    %45 = arith.addf %0, %1 : vector<2x128xf32>
    %46 = arith.mulf %41, %12 : vector<2x128xf32>
    %47 = arith.addf %15, %46 : vector<2x128xf32>
    %48 = arith.mulf %47, %24 : vector<2x128xf32>
    %c0_16 = arith.constant 0 : index
    %c0_17 = arith.constant 0 : index
    %49 = vector.load %arg3[%c0_16, %c0_17] : memref<2x896xf32, #tpu.memory_space<vmem>>, vector<2x128xf32>
    tpu.vector_store %arg3[%c0_16, %c0_17], %48 {strides = array<i32>} : memref<2x896xf32, #tpu.memory_space<vmem>>, vector<2x128xf32>,
    %50 = arith.mulf %0, %15 : vector<2x128xf32>
    %51 = arith.mulf %1, %12 : vector<2x128xf32>
    %52 = arith.addf %50, %51 : vector<2x128xf32>
    %53 = arith.mulf %52, %24 : vector<2x128xf32>
    %c0_18 = arith.constant 0 : index
    %c384 = arith.constant 384 : index
    %54 = vector.load %arg3[%c0_18, %c384] : memref<2x896xf32, #tpu.memory_space<vmem>>, vector<2x128xf32>
    tpu.vector_store %arg3[%c0_18, %c384], %53 {strides = array<i32>} : memref<2x896xf32, #tpu.memory_space<vmem>>, vector<2x128xf32>,
    %55 = arith.mulf %0, %12 : vector<2x128xf32>
    %56 = arith.mulf %1, %15 : vector<2x128xf32>
    %57 = arith.addf %55, %56 : vector<2x128xf32>
    %58 = arith.mulf %57, %24 : vector<2x128xf32>
    %c0_19 = arith.constant 0 : index
    %c512 = arith.constant 512 : index
    %59 = vector.load %arg3[%c0_19, %c512] : memref<2x896xf32, #tpu.memory_space<vmem>>, vector<2x128xf32>
    tpu.vector_store %arg3[%c0_19, %c512], %58 {strides = array<i32>} : memref<2x896xf32, #tpu.memory_space<vmem>>, vector<2x128xf32>,
    %60 = arith.mulf %44, %18 : vector<2x128xf32>
    %61 = arith.mulf %60, %31 : vector<2x128xf32>
    %c0_20 = arith.constant 0 : index
    %c640 = arith.constant 640 : index
    %62 = vector.load %arg3[%c0_20, %c640] : memref<2x896xf32, #tpu.memory_space<vmem>>, vector<2x128xf32>
    tpu.vector_store %arg3[%c0_20, %c640], %61 {strides = array<i32>} : memref<2x896xf32, #tpu.memory_space<vmem>>, vector<2x128xf32>,
    %cst_21 = arith.constant 0x4DE75844 : f32
    %63 = vector.broadcast %cst_21 : f32 to vector<2x128xf32>
    %64 = arith.mulf %45, %63 : vector<2x128xf32>
    %65 = arith.addf %16, %64 : vector<2x128xf32>
    %66 = arith.mulf %65, %38 : vector<2x128xf32>
    %c0_22 = arith.constant 0 : index
    %c768 = arith.constant 768 : index
    %67 = vector.load %arg3[%c0_22, %c768] : memref<2x896xf32, #tpu.memory_space<vmem>>, vector<2x128xf32>
    tpu.vector_store %arg3[%c0_22, %c768], %66 {strides = array<i32>} : memref<2x896xf32, #tpu.memory_space<vmem>>, vector<2x128xf32>,
    return
  }
  func.func @transform_0(%arg0: i32) -> (i32, i32) {
    %c0_i32 = arith.constant 0 : i32
    %c0_i32_0 = arith.constant 0 : i32
    return %arg0, %c0_i32 : i32, i32
  }
  func.func @transform_1(%arg0: i32) -> (i32, i32) {
    %c0_i32 = arith.constant 0 : i32
    %c0_i32_0 = arith.constant 0 : i32
    return %arg0, %c0_i32 : i32, i32
  }
  func.func @transform_2(%arg0: i32) -> (i32, i32) {
    %c0_i32 = arith.constant 0 : i32
    %c0_i32_0 = arith.constant 0 : i32
    return %arg0, %c0_i32 : i32, i32
  }
}

</mosaic_0001>

<llo_original>
// kernel: tpu_custom_call.1
$region0: #{tpu_custom_call.1}
  #allocation0 [shape = 'u32[]', space=smem, size = 0x4, offset = 0x4, fixed_abs, tag = 'smem constant byte address 0x4 - core index']
  #allocation1 [shape = 'u32[144,128]{1,0:T(1,128)}', space=vmem, size = 0x12000, scoped, tag = 'internal scratch']
  %s0 = inlined_call_operand.hbm [shape: f32[2,128], index: 0, kind: input, shape index: {}]
  %s1 = inlined_call_operand.hbm [shape: f32[2,128], index: 1, kind: input, shape index: {}]
  %s2 = inlined_call_operand.hbm [shape: f32[2,896], index: 2, kind: output, shape index: {}]
  %s3 = sld [smem:[#allocation0]]
  $region26: #{tpu_custom_call.1} parent=0
    _
  %s5 = ssub.s32 1, %s3
  %s6 = scalar_select 0, %s5, %s3
  $region1: #{tpu_custom_call.1} parent=0
    #allocation2 [shape = 'u8[1024]{0}', space=vmem, size = 0x400, scoped, tag = 'input window, operand 0, single buffered']
    #allocation3 [shape = 's32[1]{0}', space=sflag, size = 0x4, scoped, tag = 'scoped memory for tpu_custom_call.1']
    #allocation4 [shape = 's32[1]{0}', space=sflag, size = 0x4, scoped, tag = 'scoped memory for tpu_custom_call.1']
    #allocation5 [shape = 'u8[1024]{0}', space=vmem, size = 0x400, scoped, tag = 'input window, operand 1, single buffered']
    #allocation6 [shape = 's32[1]{0}', space=sflag, size = 0x4, scoped, tag = 'scoped memory for tpu_custom_call.1']
    #allocation7 [shape = 'u8[7168]{0}', space=vmem, size = 0x1c00, scoped, tag = 'output window, operand 0, single buffered']
    %7 = vsyncpa [#allocation3], 0
    %8 = vsyncpa [#allocation6], 0
    %9 = vsyncpa [#allocation4], 0
    // Predicated region
    $region2: #{tpu_custom_call.1} parent=1 // pred_check
      _
    $region3: #{tpu_custom_call.1} parent=1 // pred_check_branch
      %11 = sbr.rel (0) target = $region5
    $region4: #{tpu_custom_call.1} parent=1 // pred_region
      %s13 = ssub.s32 32, 32
      %14 = vsyncadd [#allocation3], %s13
      %s16 = sshll.u32 [#allocation2], 4
      %s17 = int_to_ptr.vmem [resolvable:$true] %s16
      %19 = dma.hbm_to_vmem [thread:$0]  %s0, 32, %s17, [#allocation3]
    $region5: #{tpu_custom_call.1} parent=1 // pred_fallthru
      _
    // Predicated region
    $region6: #{tpu_custom_call.1} parent=1 // pred_check
      _
    $region7: #{tpu_custom_call.1} parent=1 // pred_check_branch
      %21 = sbr.rel (0) target = $region9
    $region8: #{tpu_custom_call.1} parent=1 // pred_region
      %s23 = ssub.s32 32, 32
      %24 = vsyncadd [#allocation6], %s23
      %s26 = sshll.u32 [#allocation5], 4
      %s27 = int_to_ptr.vmem [resolvable:$true] %s26
      %29 = dma.hbm_to_vmem [thread:$0]  %s1, 32, %s27, [#allocation6]
    $region9: #{tpu_custom_call.1} parent=1 // pred_fallthru
      _
    // Predicated region
    $region10: #{tpu_custom_call.1} parent=1 // pred_check
      _
    $region11: #{tpu_custom_call.1} parent=1 // pred_check_branch
      %31 = sbr.rel (0) target = $region13
    $region12: #{tpu_custom_call.1} parent=1 // pred_region
      %32 = dma.done [#allocation3], 32
    $region13: #{tpu_custom_call.1} parent=1 // pred_fallthru
      _
    // Predicated region
    $region14: #{tpu_custom_call.1} parent=1 // pred_check
      _
    $region15: #{tpu_custom_call.1} parent=1 // pred_check_branch
      %34 = sbr.rel (0) target = $region17
    $region16: #{tpu_custom_call.1} parent=1 // pred_region
      %35 = dma.done [#allocation6], 32
    $region17: #{tpu_custom_call.1} parent=1 // pred_fallthru
      _
    %v36 = vld [vmem:[#allocation2] sm:$0x3]
    %v37 = vld [vmem:[#allocation5] sm:$0x3]
    %v38 = vsub.f32 %v36, %v37
    %v39 = vand.u32 2147483647, %v38
    %v40 = vsub.f32 1.0, %v39
    %41 = vst [vmem:[#allocation7 + $0x2] sm:$0x3] %v40
    %v42 = vsub.f32 1.0, %v36
    %43 = vst [vmem:[#allocation7 + $0x4] sm:$0x3] %v42
    %v44 = vmul.f32 %v36, 20.0
    %v45 = vmul.f32 %v44, 1.442695
    %v46 = vpow.pop %v45
    %v47 = vmul.f32 %v37, 20.0
    %v48 = vmul.f32 %v47, 1.442695
    %v49 = vpow.pop %v48
    %v50 = vmul.f32 %v46, %v49
    %v51 = vmul.f32 %v50, 2.0611537e-09
    %v52 = vadd.f32 %v46, %v49
    %v53 = vrcp.pop %v52
    %v54 = vmul.f32 %v52, %v53
    %v55 = vsub.f32 2.0, %v54
    %v56 = vmul.f32 %v53, %v55
    %v57 = vadd.f32 %v51, 1.0
    %v58 = vrcp.pop %v57
    %v59 = vmul.f32 %v57, %v58
    %v60 = vsub.f32 2.0, %v59
    %v61 = vmul.f32 %v58, %v60
    %v62 = vadd.f32 %v50, 4.8516518e+08
    %v63 = vrcp.pop %v62
    %v64 = vmul.f32 %v62, %v63
    %v65 = vsub.f32 2.0, %v64
    %v66 = vmul.f32 %v63, %v65
    %v67 = vadd.f32 %v42, %v37
    %v68 = vadd.f32 %v36, %v37
    %v69 = vsub.f32 %v68, 1.0
    %v70 = vmul.f32 %v67, %v46
    %v71 = vadd.f32 %v49, %v70
    %v72 = vmul.f32 %v71, %v56
    %73 = vst [vmem:[#allocation7] sm:$0x3] %v72
    %v74 = vmul.f32 %v36, %v49
    %v75 = vmul.f32 %v37, %v46
    %v76 = vadd.f32 %v74, %v75
    %v77 = vmul.f32 %v76, %v56
    %78 = vst [vmem:[#allocation7 + $0x6] sm:$0x3] %v77
    %v79 = vmul.f32 %v36, %v46
    %v80 = vmul.f32 %v37, %v49
    %v81 = vadd.f32 %v79, %v80
    %v82 = vmul.f32 %v81, %v56
    %83 = vst [vmem:[#allocation7 + $0x8] sm:$0x3] %v82
    %v84 = vmul.f32 %v69, %v51
    %v85 = vmul.f32 %v84, %v61
    %86 = vst [vmem:[#allocation7 + $0xa] sm:$0x3] %v85
    %v87 = vmul.f32 %v68, 4.8516518e+08
    %v88 = vadd.f32 %v50, %v87
    %v89 = vmul.f32 %v88, %v66
    %90 = vst [vmem:[#allocation7 + $0xc] sm:$0x3] %v89
    // Predicated region
    $region18: #{tpu_custom_call.1} parent=1 // pred_check
      _
    $region19: #{tpu_custom_call.1} parent=1 // pred_check_branch
      %92 = sbr.rel (0) target = $region21
    $region20: #{tpu_custom_call.1} parent=1 // pred_region
      %s94 = ssub.s32 224, 224
      %95 = vsyncadd [#allocation4], %s94
      %s97 = sshll.u32 [#allocation7], 4
      %s98 = int_to_ptr.vmem [resolvable:$true] %s97
      %100 = dma.vmem_to_hbm [thread:$0]  %s98, 224, %s2, [#allocation4]
    $region21: #{tpu_custom_call.1} parent=1 // pred_fallthru
      _
    // Predicated region
    $region22: #{tpu_custom_call.1} parent=1 // pred_check
      _
    $region23: #{tpu_custom_call.1} parent=1 // pred_check_branch
      %102 = sbr.rel (0) target = $region25
    $region24: #{tpu_custom_call.1} parent=1 // pred_region
      %103 = dma.done [#allocation4], 224
    $region25: #{tpu_custom_call.1} parent=1 // pred_fallthru
      _
    %104 = vsyncpa [#allocation3], 1
    %105 = vsyncpa [#allocation6], 1
    %106 = vsyncpa [#allocation4], 1

</llo_original>
